<compile_context>
chip_gen: v7x
topology: tpu7x:2x2x1
jax: 0.10.0
libtpu: 0.0.40
codegen_flags: <defaults>
</compile_context>

<pallas_src>
import functools

import jax
import jax.numpy as jnp
import numpy as np
from jax import lax
from jax.experimental import pallas as pl
from jax.experimental.pallas import tpu as pltpu


# ------------------------------ Pallas kernel --------------------------------


def _mod_v(idx, v):
    """idx % v on int32 vregs (bitwise AND when v is a power of two)."""
    if v & (v - 1) == 0:
        return jnp.bitwise_and(idx, v - 1)
    return lax.rem(idx, jnp.int32(v))


def _shift_gcn_kernel(x_ref, mask_ref, w_ref, g_ref, beta_ref, *rest,
                      v, n_blk, has_down, use_mxu):
    """Process a (n_blk, C, T*V) slab -> (n_blk, D, T*V) slab.

    x_ref   : (n_blk, C, TV)  input, NCHW flattened (lane axis = T*V)
    mask_ref: (C, TV)         tanh(Feature_Mask)+1, tiled over T
    w_ref   : (D, C)          Linear_weight^T
    g_ref   : (D, TV)         folded BN1d scale, tiled over T
    beta_ref: (D, TV)         folded BN1d shift (+ Linear_bias, + down bias)
    rest    : [wdn_ref (D, C)] if has_down, then o_ref (n_blk, D, TV)
    """
    if has_down:
        wdn_ref, o_ref = rest
    else:
        (o_ref,) = rest

    c_in = x_ref.shape[1]
    c_out = o_ref.shape[1]
    tv = x_ref.shape[2]

    mask = mask_ref[...]                 # (C, TV)
    w = w_ref[...]                       # (D, C)
    g = g_ref[...]                       # (D, TV)
    beta = beta_ref[...]                 # (D, TV)
    wdn = wdn_ref[...] if has_down else None

    # ---- batch-invariant shift machinery, hoisted out of the batch loop ----
    def shift_masks(rows, forward):
        # Per-row shift amount s_r = r % V; selection masks built from iotas.
        col = _mod_v(lax.broadcasted_iota(jnp.int32, (rows, tv), 1), v)
        row = lax.broadcasted_iota(jnp.int32, (rows, tv), 0)
        srow = row if rows <= v else _mod_v(row, v)
        nbits = max(min(rows, v) - 1, 0).bit_length()
        bits = [(srow & (1 << k)) > 0 for k in range(nbits)]
        nowrap = (col + srow < v) if forward else (col >= srow)
        return bits, nowrap

    in_bits, in_nowrap = shift_masks(c_in, forward=True)
    out_bits, out_nowrap = shift_masks(c_out, forward=False)

    def shift_in(xb):
        # out[r, t*V + i] = xb[r, t*V + (i + r%V) % V]  (within-frame roll)
        ra = xb
        for k, bit in enumerate(in_bits):
            ra = jnp.where(bit, pltpu.roll(ra, tv - (1 << k), axis=1), ra)
        rb = pltpu.roll(ra, v, axis=1)            # frame-wrap correction
        return jnp.where(in_nowrap, ra, rb)

    def shift_out(yb):
        # out[r, t*V + i] = yb[r, t*V + (i - r%V) % V]  (within-frame roll)
        ra = yb
        for k, bit in enumerate(out_bits):
            ra = jnp.where(bit, pltpu.roll(ra, 1 << k, axis=1), ra)
        rb = pltpu.roll(ra, tv - v, axis=1)       # frame-wrap correction
        return jnp.where(out_nowrap, ra, rb)

    # ------------------------------ batch loop ------------------------------
    for b in range(n_blk):
        x = x_ref[b]                              # (C, TV)
        xs = shift_in(x) * mask                   # shift_in + Feature_Mask

        if use_mxu:
            acc = jnp.dot(w, xs, preferred_element_type=jnp.float32)
            dn = (jnp.dot(wdn, x, preferred_element_type=jnp.float32)
                  if has_down else x)
        else:
            acc = jnp.zeros((c_out, tv), jnp.float32)
            dn = jnp.zeros((c_out, tv), jnp.float32) if has_down else x
            for c in range(c_in):
                acc = acc + w[:, c:c + 1] * xs[c:c + 1, :]
                if has_down:
                    dn = dn + wdn[:, c:c + 1] * x[c:c + 1, :]

        y = shift_out(acc) * g + beta + dn        # shift_out + BN + residual
        o_ref[b] = jnp.maximum(y, 0.0)            # single dense (D, TV) store


# ----------------------------- launch heuristics ------------------------------


def _num_tensorcores():
    """Best-effort TensorCores per device (v7x has 2, v5e/v6e have 1)."""
    try:
        dev = jax.devices()[0]
    except Exception:
        return 1
    for attr in ("num_cores", "core_count"):
        val = getattr(dev, attr, None)
        if isinstance(val, int) and val > 0:
            return max(1, min(2, val))
    return 1


def _pick_batch_block(n, c_in, c_out, tv, n_cores, *, max_unroll=8,
                      vmem_budget_bytes=12 << 20):
    """Batch elements per grid step.

    grid = n_cores grid steps when possible (grid=1 on single-TC v5e/v6e,
    2 on v7x), capped by a ~12 MiB VMEM budget (double-buffered x/out blocks
    plus working temporaries; safely inside every chip's default scoped VMEM)
    and by a small unroll bound for the in-kernel Python batch loop.
    """
    per_elem = (2 * c_in + 4 * c_out) * tv * 4
    cap = max(1, vmem_budget_bytes // max(per_elem, 1))
    n_blk = -(-n // max(n_cores, 1))              # ceil: keep every core busy
    return max(1, min(n_blk, cap, max_unroll, n))


def shift_gcn_forward(x_nchw, folded):
    """x_nchw: (N, Cin, T, V) f32 -> (N, Cout, T, V) f32."""
    n, c_in, t, v = x_nchw.shape
    c_out = folded["w_dc"].shape[0]
    tv = t * v

    # NCHW is already the ideal (C, T*V) layout: just a (free) reshape.
    x = x_nchw.reshape(n, c_in, tv)

    has_down = folded["wdn"] is not None
    use_mxu = min(c_in, c_out) >= 64              # MXU path for real layer sizes

    n_cores = _num_tensorcores()
    n_blk = _pick_batch_block(n, c_in, c_out, tv, n_cores)
    n_pad = (-n) % n_blk
    if n_pad:                                     # masked tail via zero padding
        x = jnp.pad(x, ((0, n_pad), (0, 0), (0, 0)))
    grid = ((n + n_pad) // n_blk,)

    full2d = lambda shape: pl.BlockSpec(shape, lambda i: (0, 0))

    inputs = [x, folded["mask_tv"], folded["w_dc"], folded["g_tv"],
              folded["beta_tv"]]
    in_specs = [
        pl.BlockSpec((n_blk, c_in, tv), lambda i: (i, 0, 0)),   # x
        full2d((c_in, tv)),                                     # feature mask
        full2d((c_out, c_in)),                                  # W^T
        full2d((c_out, tv)),                                    # BN scale
        full2d((c_out, tv)),                                    # BN shift (folded)
    ]
    if has_down:
        inputs.append(folded["wdn"])
        in_specs.append(full2d((c_out, c_in)))                  # down conv (folded)

    kernel = functools.partial(_shift_gcn_kernel, v=v, n_blk=n_blk,
                               has_down=has_down, use_mxu=use_mxu)

    out = pl.pallas_call(
        kernel,
        out_shape=jax.ShapeDtypeStruct((n + n_pad, c_out, tv), jnp.float32),
        grid_spec=pltpu.PrefetchScalarGridSpec(
            num_scalar_prefetch=0,
            grid=grid,
            in_specs=in_specs,
            out_specs=pl.BlockSpec((n_blk, c_out, tv), lambda i: (i, 0, 0)),
        ),
        compiler_params=pltpu.CompilerParams(
            dimension_semantics=("parallel",)),
    )(*inputs)

    if n_pad:
        out = out[:n]
    return out.reshape(n, c_out, t, v)


# ---------------------------- parameter building -----------------------------


def _shift_indices(num_point, channels, sign):
    """Exact replica of the PyTorch index_array construction."""
    idx = np.empty(num_point * channels, dtype=np.int32)
    for i in range(num_point):
        for j in range(channels):
            idx[i * channels + j] = (
                i * channels + j + sign * j * channels) % (channels * num_point)
    return jnp.asarray(idx)


def make_params(key, num_point, in_channels, out_channels):
    """Raw (unfolded) parameters, randomized to exercise all terms."""
    ks = jax.random.split(key, 13)
    p = {}
    p["W"] = jax.random.normal(ks[0], (in_channels, out_channels),
                               jnp.float32) * np.sqrt(1.0 / out_channels)
    p["lb"] = 0.1 * jax.random.normal(ks[1], (out_channels,), jnp.float32)
    p["FM"] = 0.5 * jax.random.normal(ks[2], (num_point, in_channels),
                                      jnp.float32)
    vd = num_point * out_channels
    p["bn_g"] = jax.random.uniform(ks[3], (vd,), jnp.float32, 0.5, 1.5)
    p["bn_b"] = 0.1 * jax.random.normal(ks[4], (vd,), jnp.float32)
    p["bn_m"] = 0.1 * jax.random.normal(ks[5], (vd,), jnp.float32)
    p["bn_v"] = jax.random.uniform(ks[6], (vd,), jnp.float32, 0.5, 1.5)
    if in_channels != out_channels:
        p["cw"] = jax.random.normal(ks[7], (out_channels, in_channels),
                                    jnp.float32) * np.sqrt(2.0 / out_channels)
        p["cb"] = 0.1 * jax.random.normal(ks[8], (out_channels,), jnp.float32)
        p["bn2_g"] = jax.random.uniform(ks[9], (out_channels,), jnp.float32,
                                        0.5, 1.5)
        p["bn2_b"] = 0.1 * jax.random.normal(ks[10], (out_channels,),
                                             jnp.float32)
        p["bn2_m"] = 0.1 * jax.random.normal(ks[11], (out_channels,),
                                             jnp.float32)
        p["bn2_v"] = jax.random.uniform(ks[12], (out_channels,), jnp.float32,
                                        0.5, 1.5)
    return p


def fold_params(p, num_point, t, eps=1e-5):
    """Fold BN affines / biases into kernel-layout buffers (done once, host)."""
    v = num_point
    c_in, c_out = p["W"].shape

    mask_vc = jnp.tanh(p["FM"]) + 1.0                       # (V, C)
    mask_tv = jnp.tile(mask_vc.T, (1, t))                   # (C, T*V)
    w_dc = p["W"].T                                         # (D, C)

    g1 = p["bn_g"] / jnp.sqrt(p["bn_v"] + eps)              # (V*D,)
    b1 = p["bn_b"] - p["bn_m"] * g1
    g_dv = g1.reshape(v, c_out).T                           # (D, V)
    b_dv = b1.reshape(v, c_out).T
    # Linear_bias is constant over (t, v) per d -> commutes with shift_out,
    # fold it through the BN affine.
    b_dv = b_dv + p["lb"][:, None] * g_dv

    if "cw" in p:
        a2 = p["bn2_g"] / jnp.sqrt(p["bn2_v"] + eps)        # (D,)
        wdn = a2[:, None] * p["cw"]                         # (D, C)
        bdn = a2 * p["cb"] + (p["bn2_b"] - p["bn2_m"] * a2)
        b_dv = b_dv + bdn[:, None]                          # fold down-path bias
    else:
        wdn = None

    g_tv = jnp.tile(g_dv, (1, t))                           # (D, T*V)
    beta_tv = jnp.tile(b_dv, (1, t))                        # (D, T*V)

    return {"mask_tv": mask_tv, "w_dc": w_dc, "g_tv": g_tv,
            "beta_tv": beta_tv, "wdn": wdn}


# ---------------------------- pure-JAX reference -----------------------------


def reference_forward(x0, p, shift_in_idx, shift_out_idx, eps=1e-5):
    """Direct transcription of the PyTorch forward (eval-mode BN)."""
    n, c, t, v = x0.shape
    d = p["W"].shape[1]
    hi = lax.Precision.HIGHEST

    x = jnp.transpose(x0, (0, 2, 3, 1)).reshape(n * t, v * c)
    x = jnp.take(x, shift_in_idx, axis=1)
    x = x.reshape(n * t, v, c)
    x = x * (jnp.tanh(p["FM"]) + 1.0)[None]
    x = jnp.einsum("nwc,cd->nwd", x, p["W"], precision=hi) + p["lb"]
    x = x.reshape(n * t, v * d)
    x = jnp.take(x, shift_out_idx, axis=1)
    g1 = p["bn_g"] / jnp.sqrt(p["bn_v"] + eps)
    x = (x - p["bn_m"]) * g1 + p["bn_b"]
    x = x.reshape(n, t, v, d).transpose(0, 3, 1, 2)
    if "cw" in p:
        dn = jnp.einsum("dc,nctv->ndtv", p["cw"], x0, precision=hi)
        dn = dn + p["cb"][None, :, None, None]
        a2 = p["bn2_g"] / jnp.sqrt(p["bn2_v"] + eps)
        dn = ((dn - p["bn2_m"][None, :, None, None])
              * a2[None, :, None, None] + p["bn2_b"][None, :, None, None])
    else:
        dn = x0
    return jnp.maximum(x + dn, 0.0)


# ------------------------------------ main ------------------------------------


if __name__ == "__main__":
    N, V, Cin, Cout, T = 2, 16, 4, 8, 16

    key = jax.random.PRNGKey(0)
    k_x, k_p = jax.random.split(key)
    x0 = jax.random.normal(k_x, (N, Cin, T, V), jnp.float32)

    params = make_params(k_p, V, Cin, Cout)
    folded = fold_params(params, V, T)

    out = jax.block_until_ready(shift_gcn_forward(x0, folded))

    shift_in_idx = _shift_indices(V, Cin, +1)
    shift_out_idx = _shift_indices(V, Cout, -1)
    ref = jax.block_until_ready(
        reference_forward(x0, params, shift_in_idx, shift_out_idx))

    np.testing.assert_allclose(np.asarray(out), np.asarray(ref),
                               rtol=1e-4, atol=1e-4)
    assert out.shape == (N, Cout, T, V)
    print("KERNEL_OK")
</pallas_src>

<mosaic_0001>
module attributes {stable_mosaic.version = 11 : i64} {
  func.func @_shift_gcn_kernel(%arg0: i32, %arg1: memref<2x4x256xf32, #tpu.memory_space<vmem>>, %arg2: memref<4x256xf32, #tpu.memory_space<vmem>>, %arg3: memref<8x4xf32, #tpu.memory_space<vmem>>, %arg4: memref<8x256xf32, #tpu.memory_space<vmem>>, %arg5: memref<8x256xf32, #tpu.memory_space<vmem>>, %arg6: memref<8x4xf32, #tpu.memory_space<vmem>>, %arg7: memref<2x8x256xf32, #tpu.memory_space<vmem>>) attributes {dimension_semantics = [#tpu.dimension_semantics<parallel>], iteration_bounds = array<i64: 1>, scalar_prefetch = 0 : i64, scratch_operands = 0 : i64, tpu.core_type = #tpu.core_type<tc>, window_params = [{transform_indices = @transform_0, window_bounds = array<i64: 2, 4, 256>}, {pipeline_mode = #tpu.pipeline_mode<synchronous>, transform_indices = @transform_1, window_bounds = array<i64: 4, 256>}, {pipeline_mode = #tpu.pipeline_mode<synchronous>, transform_indices = @transform_2, window_bounds = array<i64: 8, 4>}, {pipeline_mode = #tpu.pipeline_mode<synchronous>, transform_indices = @transform_3, window_bounds = array<i64: 8, 256>}, {pipeline_mode = #tpu.pipeline_mode<synchronous>, transform_indices = @transform_4, window_bounds = array<i64: 8, 256>}, {pipeline_mode = #tpu.pipeline_mode<synchronous>, transform_indices = @transform_5, window_bounds = array<i64: 8, 4>}, {transform_indices = @transform_6, window_bounds = array<i64: 2, 8, 256>}]} {
    %c0 = arith.constant 0 : index
    %c0_0 = arith.constant 0 : index
    %0 = vector.load %arg2[%c0, %c0_0] : memref<4x256xf32, #tpu.memory_space<vmem>>, vector<4x256xf32>
    %c0_1 = arith.constant 0 : index
    %c0_2 = arith.constant 0 : index
    %1 = vector.load %arg3[%c0_1, %c0_2] : memref<8x4xf32, #tpu.memory_space<vmem>>, vector<8x4xf32>
    %c0_3 = arith.constant 0 : index
    %c0_4 = arith.constant 0 : index
    %2 = vector.load %arg4[%c0_3, %c0_4] : memref<8x256xf32, #tpu.memory_space<vmem>>, vector<8x256xf32>
    %c0_5 = arith.constant 0 : index
    %c0_6 = arith.constant 0 : index
    %3 = vector.load %arg5[%c0_5, %c0_6] : memref<8x256xf32, #tpu.memory_space<vmem>>, vector<8x256xf32>
    %c0_7 = arith.constant 0 : index
    %c0_8 = arith.constant 0 : index
    %4 = vector.load %arg6[%c0_7, %c0_8] : memref<8x4xf32, #tpu.memory_space<vmem>>, vector<8x4xf32>
    %5 = tpu.iota {dimensions = array<i32: 1>} : vector<4x256xi32>
    %c15_i32 = arith.constant 15 : i32
    %6 = vector.broadcast %c15_i32 : i32 to vector<4x256xi32>
    %7 = arith.andi %5, %6 : vector<4x256xi32>
    %8 = tpu.iota {dimensions = array<i32: 0>} : vector<4x256xi32>
    %c1_i32 = arith.constant 1 : i32
    %9 = vector.broadcast %c1_i32 : i32 to vector<4x256xi32>
    %10 = arith.andi %8, %9 : vector<4x256xi32>
    %c0_i32 = arith.constant 0 : i32
    %11 = vector.broadcast %c0_i32 : i32 to vector<4x256xi32>
    %12 = arith.cmpi sgt, %10, %11 : vector<4x256xi32>
    %c2_i32 = arith.constant 2 : i32
    %13 = vector.broadcast %c2_i32 : i32 to vector<4x256xi32>
    %14 = arith.andi %8, %13 : vector<4x256xi32>
    %c0_i32_9 = arith.constant 0 : i32
    %15 = vector.broadcast %c0_i32_9 : i32 to vector<4x256xi32>
    %16 = arith.cmpi sgt, %14, %15 : vector<4x256xi32>
    %17 = arith.addi %7, %8 : vector<4x256xi32>
    %c16_i32 = arith.constant 16 : i32
    %18 = vector.broadcast %c16_i32 : i32 to vector<4x256xi32>
    %19 = arith.cmpi slt, %17, %18 : vector<4x256xi32>
    %20 = tpu.iota {dimensions = array<i32: 1>} : vector<8x256xi32>
    %c15_i32_10 = arith.constant 15 : i32
    %21 = vector.broadcast %c15_i32_10 : i32 to vector<8x256xi32>
    %22 = arith.andi %20, %21 : vector<8x256xi32>
    %23 = tpu.iota {dimensions = array<i32: 0>} : vector<8x256xi32>
    %c1_i32_11 = arith.constant 1 : i32
    %24 = vector.broadcast %c1_i32_11 : i32 to vector<8x256xi32>
    %25 = arith.andi %23, %24 : vector<8x256xi32>
    %c0_i32_12 = arith.constant 0 : i32
    %26 = vector.broadcast %c0_i32_12 : i32 to vector<8x256xi32>
    %27 = arith.cmpi sgt, %25, %26 : vector<8x256xi32>
    %c2_i32_13 = arith.constant 2 : i32
    %28 = vector.broadcast %c2_i32_13 : i32 to vector<8x256xi32>
    %29 = arith.andi %23, %28 : vector<8x256xi32>
    %c0_i32_14 = arith.constant 0 : i32
    %30 = vector.broadcast %c0_i32_14 : i32 to vector<8x256xi32>
    %31 = arith.cmpi sgt, %29, %30 : vector<8x256xi32>
    %c4_i32 = arith.constant 4 : i32
    %32 = vector.broadcast %c4_i32 : i32 to vector<8x256xi32>
    %33 = arith.andi %23, %32 : vector<8x256xi32>
    %c0_i32_15 = arith.constant 0 : i32
    %34 = vector.broadcast %c0_i32_15 : i32 to vector<8x256xi32>
    %35 = arith.cmpi sgt, %33, %34 : vector<8x256xi32>
    %36 = arith.cmpi sge, %22, %23 : vector<8x256xi32>
    %c0_16 = arith.constant 0 : index
    %c0_17 = arith.constant 0 : index
    %c0_18 = arith.constant 0 : index
    %37 = vector.load %arg1[%c0_16, %c0_17, %c0_18] : memref<2x4x256xf32, #tpu.memory_space<vmem>>, vector<1x4x256xf32>
    %38 = vector.shape_cast %37 : vector<1x4x256xf32> to vector<4x256xf32>
    %c255_i32 = arith.constant 255 : i32
    %39 = tpu.dynamic_rotate %38 by %c255_i32 dim 1 : vector<4x256xf32>, i32 -> vector<4x256xf32>
    %40 = arith.select %12, %39, %38 : vector<4x256xi1>, vector<4x256xf32>
    %c254_i32 = arith.constant 254 : i32
    %41 = tpu.dynamic_rotate %40 by %c254_i32 dim 1 : vector<4x256xf32>, i32 -> vector<4x256xf32>
    %42 = arith.select %16, %41, %40 : vector<4x256xi1>, vector<4x256xf32>
    %c16_i32_19 = arith.constant 16 : i32
    %43 = tpu.dynamic_rotate %42 by %c16_i32_19 dim 1 : vector<4x256xf32>, i32 -> vector<4x256xf32>
    %44 = arith.select %19, %42, %43 : vector<4x256xi1>, vector<4x256xf32>
    %45 = arith.mulf %44, %0 : vector<4x256xf32>
    %cst = arith.constant 0.000000e+00 : f32
    %46 = vector.broadcast %cst : f32 to vector<8x256xf32>
    %cst_20 = arith.constant 0.000000e+00 : f32
    %47 = vector.broadcast %cst_20 : f32 to vector<8x256xf32>
    %48 = vector.extract_strided_slice %1 {offsets = [0, 0], sizes = [8, 1], strides = [1, 1]} : vector<8x4xf32> to vector<8x1xf32>
    %49 = vector.extract_strided_slice %45 {offsets = [0, 0], sizes = [1, 256], strides = [1, 1]} : vector<4x256xf32> to vector<1x256xf32>
    %50 = vector.broadcast %48 : vector<8x1xf32> to vector<8x256xf32>
    %51 = vector.broadcast %49 : vector<1x256xf32> to vector<8x256xf32>
    %52 = arith.mulf %50, %51 : vector<8x256xf32>
    %53 = arith.addf %46, %52 : vector<8x256xf32>
    %54 = vector.extract_strided_slice %4 {offsets = [0, 0], sizes = [8, 1], strides = [1, 1]} : vector<8x4xf32> to vector<8x1xf32>
    %55 = vector.extract_strided_slice %38 {offsets = [0, 0], sizes = [1, 256], strides = [1, 1]} : vector<4x256xf32> to vector<1x256xf32>
    %56 = vector.broadcast %54 : vector<8x1xf32> to vector<8x256xf32>
    %57 = vector.broadcast %55 : vector<1x256xf32> to vector<8x256xf32>
    %58 = arith.mulf %56, %57 : vector<8x256xf32>
    %59 = arith.addf %47, %58 : vector<8x256xf32>
    %60 = vector.extract_strided_slice %1 {offsets = [0, 1], sizes = [8, 1], strides = [1, 1]} : vector<8x4xf32> to vector<8x1xf32>
    %61 = vector.extract_strided_slice %45 {offsets = [1, 0], sizes = [1, 256], strides = [1, 1]} : vector<4x256xf32> to vector<1x256xf32>
    %62 = vector.broadcast %60 : vector<8x1xf32> to vector<8x256xf32>
    %63 = vector.broadcast %61 : vector<1x256xf32> to vector<8x256xf32>
    %64 = arith.mulf %62, %63 : vector<8x256xf32>
    %65 = arith.addf %53, %64 : vector<8x256xf32>
    %66 = vector.extract_strided_slice %4 {offsets = [0, 1], sizes = [8, 1], strides = [1, 1]} : vector<8x4xf32> to vector<8x1xf32>
    %67 = vector.extract_strided_slice %38 {offsets = [1, 0], sizes = [1, 256], strides = [1, 1]} : vector<4x256xf32> to vector<1x256xf32>
    %68 = vector.broadcast %66 : vector<8x1xf32> to vector<8x256xf32>
    %69 = vector.broadcast %67 : vector<1x256xf32> to vector<8x256xf32>
    %70 = arith.mulf %68, %69 : vector<8x256xf32>
    %71 = arith.addf %59, %70 : vector<8x256xf32>
    %72 = vector.extract_strided_slice %1 {offsets = [0, 2], sizes = [8, 1], strides = [1, 1]} : vector<8x4xf32> to vector<8x1xf32>
    %73 = vector.extract_strided_slice %45 {offsets = [2, 0], sizes = [1, 256], strides = [1, 1]} : vector<4x256xf32> to vector<1x256xf32>
    %74 = vector.broadcast %72 : vector<8x1xf32> to vector<8x256xf32>
    %75 = vector.broadcast %73 : vector<1x256xf32> to vector<8x256xf32>
    %76 = arith.mulf %74, %75 : vector<8x256xf32>
    %77 = arith.addf %65, %76 : vector<8x256xf32>
    %78 = vector.extract_strided_slice %4 {offsets = [0, 2], sizes = [8, 1], strides = [1, 1]} : vector<8x4xf32> to vector<8x1xf32>
    %79 = vector.extract_strided_slice %38 {offsets = [2, 0], sizes = [1, 256], strides = [1, 1]} : vector<4x256xf32> to vector<1x256xf32>
    %80 = vector.broadcast %78 : vector<8x1xf32> to vector<8x256xf32>
    %81 = vector.broadcast %79 : vector<1x256xf32> to vector<8x256xf32>
    %82 = arith.mulf %80, %81 : vector<8x256xf32>
    %83 = arith.addf %71, %82 : vector<8x256xf32>
    %84 = vector.extract_strided_slice %1 {offsets = [0, 3], sizes = [8, 1], strides = [1, 1]} : vector<8x4xf32> to vector<8x1xf32>
    %85 = vector.extract_strided_slice %45 {offsets = [3, 0], sizes = [1, 256], strides = [1, 1]} : vector<4x256xf32> to vector<1x256xf32>
    %86 = vector.broadcast %84 : vector<8x1xf32> to vector<8x256xf32>
    %87 = vector.broadcast %85 : vector<1x256xf32> to vector<8x256xf32>
    %88 = arith.mulf %86, %87 : vector<8x256xf32>
    %89 = arith.addf %77, %88 : vector<8x256xf32>
    %90 = vector.extract_strided_slice %4 {offsets = [0, 3], sizes = [8, 1], strides = [1, 1]} : vector<8x4xf32> to vector<8x1xf32>
    %91 = vector.extract_strided_slice %38 {offsets = [3, 0], sizes = [1, 256], strides = [1, 1]} : vector<4x256xf32> to vector<1x256xf32>
    %92 = vector.broadcast %90 : vector<8x1xf32> to vector<8x256xf32>
    %93 = vector.broadcast %91 : vector<1x256xf32> to vector<8x256xf32>
    %94 = arith.mulf %92, %93 : vector<8x256xf32>
    %95 = arith.addf %83, %94 : vector<8x256xf32>
    %c1_i32_21 = arith.constant 1 : i32
    %96 = tpu.dynamic_rotate %89 by %c1_i32_21 dim 1 : vector<8x256xf32>, i32 -> vector<8x256xf32>
    %97 = arith.select %27, %96, %89 : vector<8x256xi1>, vector<8x256xf32>
    %c2_i32_22 = arith.constant 2 : i32
    %98 = tpu.dynamic_rotate %97 by %c2_i32_22 dim 1 : vector<8x256xf32>, i32 -> vector<8x256xf32>
    %99 = arith.select %31, %98, %97 : vector<8x256xi1>, vector<8x256xf32>
    %c4_i32_23 = arith.constant 4 : i32
    %100 = tpu.dynamic_rotate %99 by %c4_i32_23 dim 1 : vector<8x256xf32>, i32 -> vector<8x256xf32>
    %101 = arith.select %35, %100, %99 : vector<8x256xi1>, vector<8x256xf32>
    %c240_i32 = arith.constant 240 : i32
    %102 = tpu.dynamic_rotate %101 by %c240_i32 dim 1 : vector<8x256xf32>, i32 -> vector<8x256xf32>
    %103 = arith.select %36, %101, %102 : vector<8x256xi1>, vector<8x256xf32>
    %104 = arith.mulf %103, %2 : vector<8x256xf32>
    %105 = arith.addf %104, %3 : vector<8x256xf32>
    %106 = arith.addf %105, %95 : vector<8x256xf32>
    %cst_24 = arith.constant 0.000000e+00 : f32
    %107 = vector.broadcast %cst_24 : f32 to vector<8x256xf32>
    %108 = arith.maximumf %106, %107 : vector<8x256xf32>
    %c0_25 = arith.constant 0 : index
    %c0_26 = arith.constant 0 : index
    %c0_27 = arith.constant 0 : index
    %109 = vector.load %arg7[%c0_25, %c0_26, %c0_27] : memref<2x8x256xf32, #tpu.memory_space<vmem>>, vector<1x8x256xf32>
    %110 = vector.shape_cast %109 : vector<1x8x256xf32> to vector<8x256xf32>
    %111 = vector.shape_cast %108 : vector<8x256xf32> to vector<1x8x256xf32>
    tpu.vector_store %arg7[%c0_25, %c0_26, %c0_27], %111 {strides = array<i32>} : memref<2x8x256xf32, #tpu.memory_space<vmem>>, vector<1x8x256xf32>,
    %c1 = arith.constant 1 : index
    %c0_28 = arith.constant 0 : index
    %c0_29 = arith.constant 0 : index
    %112 = vector.load %arg1[%c1, %c0_28, %c0_29] : memref<2x4x256xf32, #tpu.memory_space<vmem>>, vector<1x4x256xf32>
    %113 = vector.shape_cast %112 : vector<1x4x256xf32> to vector<4x256xf32>
    %c255_i32_30 = arith.constant 255 : i32
    %114 = tpu.dynamic_rotate %113 by %c255_i32_30 dim 1 : vector<4x256xf32>, i32 -> vector<4x256xf32>
    %115 = arith.select %12, %114, %113 : vector<4x256xi1>, vector<4x256xf32>
    %c254_i32_31 = arith.constant 254 : i32
    %116 = tpu.dynamic_rotate %115 by %c254_i32_31 dim 1 : vector<4x256xf32>, i32 -> vector<4x256xf32>
    %117 = arith.select %16, %116, %115 : vector<4x256xi1>, vector<4x256xf32>
    %c16_i32_32 = arith.constant 16 : i32
    %118 = tpu.dynamic_rotate %117 by %c16_i32_32 dim 1 : vector<4x256xf32>, i32 -> vector<4x256xf32>
    %119 = arith.select %19, %117, %118 : vector<4x256xi1>, vector<4x256xf32>
    %120 = arith.mulf %119, %0 : vector<4x256xf32>
    %cst_33 = arith.constant 0.000000e+00 : f32
    %121 = vector.broadcast %cst_33 : f32 to vector<8x256xf32>
    %cst_34 = arith.constant 0.000000e+00 : f32
    %122 = vector.broadcast %cst_34 : f32 to vector<8x256xf32>
    %123 = vector.extract_strided_slice %1 {offsets = [0, 0], sizes = [8, 1], strides = [1, 1]} : vector<8x4xf32> to vector<8x1xf32>
    %124 = vector.extract_strided_slice %120 {offsets = [0, 0], sizes = [1, 256], strides = [1, 1]} : vector<4x256xf32> to vector<1x256xf32>
    %125 = vector.broadcast %123 : vector<8x1xf32> to vector<8x256xf32>
    %126 = vector.broadcast %124 : vector<1x256xf32> to vector<8x256xf32>
    %127 = arith.mulf %125, %126 : vector<8x256xf32>
    %128 = arith.addf %121, %127 : vector<8x256xf32>
    %129 = vector.extract_strided_slice %4 {offsets = [0, 0], sizes = [8, 1], strides = [1, 1]} : vector<8x4xf32> to vector<8x1xf32>
    %130 = vector.extract_strided_slice %113 {offsets = [0, 0], sizes = [1, 256], strides = [1, 1]} : vector<4x256xf32> to vector<1x256xf32>
    %131 = vector.broadcast %129 : vector<8x1xf32> to vector<8x256xf32>
    %132 = vector.broadcast %130 : vector<1x256xf32> to vector<8x256xf32>
    %133 = arith.mulf %131, %132 : vector<8x256xf32>
    %134 = arith.addf %122, %133 : vector<8x256xf32>
    %135 = vector.extract_strided_slice %1 {offsets = [0, 1], sizes = [8, 1], strides = [1, 1]} : vector<8x4xf32> to vector<8x1xf32>
    %136 = vector.extract_strided_slice %120 {offsets = [1, 0], sizes = [1, 256], strides = [1, 1]} : vector<4x256xf32> to vector<1x256xf32>
    %137 = vector.broadcast %135 : vector<8x1xf32> to vector<8x256xf32>
    %138 = vector.broadcast %136 : vector<1x256xf32> to vector<8x256xf32>
    %139 = arith.mulf %137, %138 : vector<8x256xf32>
    %140 = arith.addf %128, %139 : vector<8x256xf32>
    %141 = vector.extract_strided_slice %4 {offsets = [0, 1], sizes = [8, 1], strides = [1, 1]} : vector<8x4xf32> to vector<8x1xf32>
    %142 = vector.extract_strided_slice %113 {offsets = [1, 0], sizes = [1, 256], strides = [1, 1]} : vector<4x256xf32> to vector<1x256xf32>
    %143 = vector.broadcast %141 : vector<8x1xf32> to vector<8x256xf32>
    %144 = vector.broadcast %142 : vector<1x256xf32> to vector<8x256xf32>
    %145 = arith.mulf %143, %144 : vector<8x256xf32>
    %146 = arith.addf %134, %145 : vector<8x256xf32>
    %147 = vector.extract_strided_slice %1 {offsets = [0, 2], sizes = [8, 1], strides = [1, 1]} : vector<8x4xf32> to vector<8x1xf32>
    %148 = vector.extract_strided_slice %120 {offsets = [2, 0], sizes = [1, 256], strides = [1, 1]} : vector<4x256xf32> to vector<1x256xf32>
    %149 = vector.broadcast %147 : vector<8x1xf32> to vector<8x256xf32>
    %150 = vector.broadcast %148 : vector<1x256xf32> to vector<8x256xf32>
    %151 = arith.mulf %149, %150 : vector<8x256xf32>
    %152 = arith.addf %140, %151 : vector<8x256xf32>
    %153 = vector.extract_strided_slice %4 {offsets = [0, 2], sizes = [8, 1], strides = [1, 1]} : vector<8x4xf32> to vector<8x1xf32>
    %154 = vector.extract_strided_slice %113 {offsets = [2, 0], sizes = [1, 256], strides = [1, 1]} : vector<4x256xf32> to vector<1x256xf32>
    %155 = vector.broadcast %153 : vector<8x1xf32> to vector<8x256xf32>
    %156 = vector.broadcast %154 : vector<1x256xf32> to vector<8x256xf32>
    %157 = arith.mulf %155, %156 : vector<8x256xf32>
    %158 = arith.addf %146, %157 : vector<8x256xf32>
    %159 = vector.extract_strided_slice %1 {offsets = [0, 3], sizes = [8, 1], strides = [1, 1]} : vector<8x4xf32> to vector<8x1xf32>
    %160 = vector.extract_strided_slice %120 {offsets = [3, 0], sizes = [1, 256], strides = [1, 1]} : vector<4x256xf32> to vector<1x256xf32>
    %161 = vector.broadcast %159 : vector<8x1xf32> to vector<8x256xf32>
    %162 = vector.broadcast %160 : vector<1x256xf32> to vector<8x256xf32>
    %163 = arith.mulf %161, %162 : vector<8x256xf32>
    %164 = arith.addf %152, %163 : vector<8x256xf32>
    %165 = vector.extract_strided_slice %4 {offsets = [0, 3], sizes = [8, 1], strides = [1, 1]} : vector<8x4xf32> to vector<8x1xf32>
    %166 = vector.extract_strided_slice %113 {offsets = [3, 0], sizes = [1, 256], strides = [1, 1]} : vector<4x256xf32> to vector<1x256xf32>
    %167 = vector.broadcast %165 : vector<8x1xf32> to vector<8x256xf32>
    %168 = vector.broadcast %166 : vector<1x256xf32> to vector<8x256xf32>
    %169 = arith.mulf %167, %168 : vector<8x256xf32>
    %170 = arith.addf %158, %169 : vector<8x256xf32>
    %c1_i32_35 = arith.constant 1 : i32
    %171 = tpu.dynamic_rotate %164 by %c1_i32_35 dim 1 : vector<8x256xf32>, i32 -> vector<8x256xf32>
    %172 = arith.select %27, %171, %164 : vector<8x256xi1>, vector<8x256xf32>
    %c2_i32_36 = arith.constant 2 : i32
    %173 = tpu.dynamic_rotate %172 by %c2_i32_36 dim 1 : vector<8x256xf32>, i32 -> vector<8x256xf32>
    %174 = arith.select %31, %173, %172 : vector<8x256xi1>, vector<8x256xf32>
    %c4_i32_37 = arith.constant 4 : i32
    %175 = tpu.dynamic_rotate %174 by %c4_i32_37 dim 1 : vector<8x256xf32>, i32 -> vector<8x256xf32>
    %176 = arith.select %35, %175, %174 : vector<8x256xi1>, vector<8x256xf32>
    %c240_i32_38 = arith.constant 240 : i32
    %177 = tpu.dynamic_rotate %176 by %c240_i32_38 dim 1 : vector<8x256xf32>, i32 -> vector<8x256xf32>
    %178 = arith.select %36, %176, %177 : vector<8x256xi1>, vector<8x256xf32>
    %179 = arith.mulf %178, %2 : vector<8x256xf32>
    %180 = arith.addf %179, %3 : vector<8x256xf32>
    %181 = arith.addf %180, %170 : vector<8x256xf32>
    %cst_39 = arith.constant 0.000000e+00 : f32
    %182 = vector.broadcast %cst_39 : f32 to vector<8x256xf32>
    %183 = arith.maximumf %181, %182 : vector<8x256xf32>
    %c1_40 = arith.constant 1 : index
    %c0_41 = arith.constant 0 : index
    %c0_42 = arith.constant 0 : index
    %184 = vector.load %arg7[%c1_40, %c0_41, %c0_42] : memref<2x8x256xf32, #tpu.memory_space<vmem>>, vector<1x8x256xf32>
    %185 = vector.shape_cast %184 : vector<1x8x256xf32> to vector<8x256xf32>
    %186 = vector.shape_cast %183 : vector<8x256xf32> to vector<1x8x256xf32>
    tpu.vector_store %arg7[%c1_40, %c0_41, %c0_42], %186 {strides = array<i32>} : memref<2x8x256xf32, #tpu.memory_space<vmem>>, vector<1x8x256xf32>,
    return
  }
  func.func @transform_0(%arg0: i32) -> (i32, i32, i32) {
    %c0_i32 = arith.constant 0 : i32
    %c0_i32_0 = arith.constant 0 : i32
    %c0_i32_1 = arith.constant 0 : i32
    return %arg0, %c0_i32, %c0_i32_0 : i32, i32, i32
  }
  func.func @transform_1(%arg0: i32) -> (i32, i32) {
    %c0_i32 = arith.constant 0 : i32
    %c0_i32_0 = arith.constant 0 : i32
    %c0_i32_1 = arith.constant 0 : i32
    return %c0_i32, %c0_i32_0 : i32, i32
  }
  func.func @transform_2(%arg0: i32) -> (i32, i32) {
    %c0_i32 = arith.constant 0 : i32
    %c0_i32_0 = arith.constant 0 : i32
    %c0_i32_1 = arith.constant 0 : i32
    return %c0_i32, %c0_i32_0 : i32, i32
  }
  func.func @transform_3(%arg0: i32) -> (i32, i32) {
    %c0_i32 = arith.constant 0 : i32
    %c0_i32_0 = arith.constant 0 : i32
    %c0_i32_1 = arith.constant 0 : i32
    return %c0_i32, %c0_i32_0 : i32, i32
  }
  func.func @transform_4(%arg0: i32) -> (i32, i32) {
    %c0_i32 = arith.constant 0 : i32
    %c0_i32_0 = arith.constant 0 : i32
    %c0_i32_1 = arith.constant 0 : i32
    return %c0_i32, %c0_i32_0 : i32, i32
  }
  func.func @transform_5(%arg0: i32) -> (i32, i32) {
    %c0_i32 = arith.constant 0 : i32
    %c0_i32_0 = arith.constant 0 : i32
    %c0_i32_1 = arith.constant 0 : i32
    return %c0_i32, %c0_i32_0 : i32, i32
  }
  func.func @transform_6(%arg0: i32) -> (i32, i32, i32) {
    %c0_i32 = arith.constant 0 : i32
    %c0_i32_0 = arith.constant 0 : i32
    %c0_i32_1 = arith.constant 0 : i32
    return %arg0, %c0_i32, %c0_i32_0 : i32, i32, i32
  }
}

</mosaic_0001>

<llo_original>
// kernel: tpu_custom_call.1
$region0: #{tpu_custom_call.1}
  #allocation0 [shape = 'u32[]', space=smem, size = 0x4, offset = 0x4, fixed_abs, tag = 'smem constant byte address 0x4 - core index']
  #allocation1 [shape = 'u32[144,128]{1,0:T(1,128)}', space=vmem, size = 0x12000, scoped, tag = 'internal scratch']
  %s0 = inlined_call_operand.vmem [shape: f32[2,4,256], index: 0, kind: input, shape index: {}]
  %s1 = inlined_call_operand.hbm [shape: f32[4,256], index: 1, kind: input, shape index: {}]
  %s2 = inlined_call_operand.vmem [shape: f32[8,4], index: 2, kind: input, shape index: {}]
  %s3 = inlined_call_operand.vmem [shape: f32[8,256], index: 3, kind: input, shape index: {}]
  %s4 = inlined_call_operand.hbm [shape: f32[8,256], index: 4, kind: input, shape index: {}]
  %s5 = inlined_call_operand.vmem [shape: f32[8,4], index: 5, kind: input, shape index: {}]
  %s6 = inlined_call_operand.hbm [shape: f32[2,8,256], index: 6, kind: output, shape index: {}]
  %s7 = sld [smem:[#allocation0]]
  $region42: #{tpu_custom_call.1} parent=0
    _
  %s9 = ssub.s32 1, %s7
  %s10 = scalar_select 0, %s9, %s7
  $region1: #{tpu_custom_call.1} parent=0
    #allocation2 [shape = 'u8[4096]{0}', space=vmem, size = 0x1000, scoped, tag = 'input window, operand 1, single buffered']
    #allocation3 [shape = 's32[1]{0}', space=sflag, size = 0x4, scoped, tag = 'scoped memory for tpu_custom_call.1']
    #allocation4 [shape = 's32[1]{0}', space=sflag, size = 0x4, scoped, tag = 'scoped memory for tpu_custom_call.1']
    #allocation5 [shape = 'u8[8192]{0}', space=vmem, size = 0x2000, scoped, tag = 'input window, operand 4, single buffered']
    #allocation6 [shape = 's32[1]{0}', space=sflag, size = 0x4, scoped, tag = 'scoped memory for tpu_custom_call.1']
    #allocation7 [shape = 'u8[16384]{0}', space=vmem, size = 0x4000, scoped, tag = 'output window, operand 0, single buffered']
    %11 = vsyncpa [#allocation3], 0
    %12 = vsyncpa [#allocation6], 0
    %13 = vsyncpa [#allocation4], 0
    // Predicated region
    $region2: #{tpu_custom_call.1} parent=1 // pred_check
      _
    $region3: #{tpu_custom_call.1} parent=1 // pred_check_branch
      %15 = sbr.rel (0) target = $region5
    $region4: #{tpu_custom_call.1} parent=1 // pred_region
      _
    $region5: #{tpu_custom_call.1} parent=1 // pred_fallthru
      _
    // Predicated region
    $region6: #{tpu_custom_call.1} parent=1 // pred_check
      _
    $region7: #{tpu_custom_call.1} parent=1 // pred_check_branch
      %17 = sbr.rel (0) target = $region9
    $region8: #{tpu_custom_call.1} parent=1 // pred_region
      %s19 = ssub.s32 128, 128
      %20 = vsyncadd [#allocation3], %s19
      %s22 = sshll.u32 [#allocation2], 4
      %s23 = int_to_ptr.vmem [resolvable:$true] %s22
      %25 = dma.hbm_to_vmem [thread:$0]  %s1, 128, %s23, [#allocation3]
    $region9: #{tpu_custom_call.1} parent=1 // pred_fallthru
      _
    // Predicated region
    $region10: #{tpu_custom_call.1} parent=1 // pred_check
      _
    $region11: #{tpu_custom_call.1} parent=1 // pred_check_branch
      %27 = sbr.rel (0) target = $region13
    $region12: #{tpu_custom_call.1} parent=1 // pred_region
      _
    $region13: #{tpu_custom_call.1} parent=1 // pred_fallthru
      _
    // Predicated region
    $region14: #{tpu_custom_call.1} parent=1 // pred_check
      _
    $region15: #{tpu_custom_call.1} parent=1 // pred_check_branch
      %29 = sbr.rel (0) target = $region17
    $region16: #{tpu_custom_call.1} parent=1 // pred_region
      _
    $region17: #{tpu_custom_call.1} parent=1 // pred_fallthru
      _
    // Predicated region
    $region18: #{tpu_custom_call.1} parent=1 // pred_check
      _
    $region19: #{tpu_custom_call.1} parent=1 // pred_check_branch
      %31 = sbr.rel (0) target = $region21
    $region20: #{tpu_custom_call.1} parent=1 // pred_region
      %s33 = ssub.s32 256, 256
      %34 = vsyncadd [#allocation6], %s33
      %s36 = sshll.u32 [#allocation5], 4
      %s37 = int_to_ptr.vmem [resolvable:$true] %s36
      %39 = dma.hbm_to_vmem [thread:$0]  %s4, 256, %s37, [#allocation6]
    $region21: #{tpu_custom_call.1} parent=1 // pred_fallthru
      _
    // Predicated region
    $region22: #{tpu_custom_call.1} parent=1 // pred_check
      _
    $region23: #{tpu_custom_call.1} parent=1 // pred_check_branch
      %41 = sbr.rel (0) target = $region25
    $region24: #{tpu_custom_call.1} parent=1 // pred_region
      _
    $region25: #{tpu_custom_call.1} parent=1 // pred_fallthru
      _
    // Predicated region
    $region26: #{tpu_custom_call.1} parent=1 // pred_check
      _
    $region27: #{tpu_custom_call.1} parent=1 // pred_check_branch
      %43 = sbr.rel (0) target = $region29
    $region28: #{tpu_custom_call.1} parent=1 // pred_region
      %44 = dma.done [#allocation3], 128
    $region29: #{tpu_custom_call.1} parent=1 // pred_fallthru
      _
    // Predicated region
    $region30: #{tpu_custom_call.1} parent=1 // pred_check
      _
    $region31: #{tpu_custom_call.1} parent=1 // pred_check_branch
      %46 = sbr.rel (0) target = $region33
    $region32: #{tpu_custom_call.1} parent=1 // pred_region
      %47 = dma.done [#allocation6], 256
    $region33: #{tpu_custom_call.1} parent=1 // pred_fallthru
      _
    %v48 = vld [vmem:[#allocation2] sm:$0xff]
    %v49 = vld [vmem:[%s2] sm:$0xff]
    %v50 = vld [vmem:[%s3] sm:$0xff]
    %v51 = vld [vmem:[%s3 + $0x8] sm:$0xff]
    %v52 = vld [vmem:[#allocation5] sm:$0xff]
    %v53 = vld [vmem:[#allocation5 + $0x8] sm:$0xff]
    %v54 = vld [vmem:[%s5] sm:$0xff]
    %v55 = vlaneseq
    %v56 = vand.u32 %v55, 127
    %v57 = vadd.s32 %v56, 128
    %v58 = vand.u32 %v56, 15
    %v59 = vand.u32 %v57, 15
    %v60 = vlaneseq
    %v61 = vshrl.u32 %v60, 7
    %v62 = vand.u32 %v61, 1
    %vm63 = vcmp.gt.s32.totalorder %v62, 0
    %v64 = vand.u32 %v61, 2
    %vm65 = vcmp.gt.s32.totalorder %v64, 0
    %v66 = vadd.s32 %v58, %v61
    %v67 = vadd.s32 %v59, %v61
    %vm68 = vcmp.lt.s32.totalorder %v66, 16
    %vm69 = vcmp.lt.s32.totalorder %v67, 16
    %v70 = vand.u32 %v61, 4
    %vm71 = vcmp.gt.s32.totalorder %v70, 0
    %vm72 = vcmp.ge.s32.totalorder %v58, %v61
    %vm73 = vcmp.ge.s32.totalorder %v59, %v61
    %v74 = vld [vmem:[%s0] sm:$0xff]
    %v76 = vcombine.high %v74, %v74
    %78 = vrot.lane.b32.xlu0 %v74, 127
    %v79 = vpop.permute.xlu0 %78
    %80 = vrot.lane.b32.xlu0 %v76, 127
    %v81 = vpop.permute.xlu0 %80
    %vm82 = vcmp.lt.s32.totalorder %v56, 127
    %v83 = vsel %vm82, %v79, %v81
    %v84 = vsel %vm82, %v81, %v79
    %v85 = vsel %vm63, %v83, %v74
    %v86 = vsel %vm63, %v84, %v76
    %87 = vrot.lane.b32.xlu0 %v85, 126
    %v88 = vpop.permute.xlu0 %87
    %89 = vrot.lane.b32.xlu0 %v86, 126
    %v90 = vpop.permute.xlu0 %89
    %vm91 = vcmp.lt.s32.totalorder %v56, 126
    %v92 = vsel %vm91, %v88, %v90
    %v93 = vsel %vm91, %v90, %v88
    %v94 = vsel %vm65, %v92, %v85
    %v95 = vsel %vm65, %v93, %v86
    %96 = vrot.lane.b32.xlu0 %v94, 16
    %v97 = vpop.permute.xlu0 %96
    %98 = vrot.lane.b32.xlu0 %v95, 16
    %v99 = vpop.permute.xlu0 %98
    %vm100 = vcmp.lt.s32.totalorder %v56, 16
    %v101 = vsel %vm100, %v97, %v99
    %v102 = vsel %vm100, %v99, %v97
    %v103 = vsel %vm68, %v94, %v102
    %v104 = vsel %vm69, %v95, %v101
    %v106 = vcombine.high %v48, %v48
    %v108 = vmul.f32 %v103, %v48
    %v109 = vmul.f32 %v104, %v106
    %111 = vset.pattern.permute.xlu0 0
    %112 = vperm.xlu0 %111, %v49
    %v113 = vpop.permute.xlu0 %112
    %v115 = vlaneseq
    %v116 = vshrl.u32 %v115, 7
    %v117 = vsub.s32 0, %v116
    %v118 = vrot.slane %v108, %v117
    %v119 = vlaneseq
    %v120 = vshrl.u32 %v119, 7
    %v121 = vsub.s32 0, %v120
    %v122 = vrot.slane %v109, %v121
    %v123 = vmul.f32 %v113, %v118
    %v124 = vmul.f32 %v113, %v122
    %v125 = vadd.f32 %v123, 0.0
    %v126 = vadd.f32 %v124, 0.0
    %128 = vset.pattern.permute.xlu0 0
    %129 = vperm.xlu0 %128, %v54
    %v130 = vpop.permute.xlu0 %129
    %v132 = vlaneseq
    %v133 = vshrl.u32 %v132, 7
    %v134 = vsub.s32 0, %v133
    %v135 = vrot.slane %v74, %v134
    %v136 = vlaneseq
    %v137 = vshrl.u32 %v136, 7
    %v138 = vsub.s32 4, %v137
    %v139 = vrot.slane %v74, %v138
    %v142 = vlaneseq
    %v143 = vshrl.u32 %v142, 7
    %v144 = vsub.s32 0, %v143
    %v145 = vrot.slane %v135, %v144
    %v146 = vlaneseq
    %v147 = vshrl.u32 %v146, 7
    %v148 = vsub.s32 0, %v147
    %v149 = vrot.slane %v139, %v148
    %v150 = vmul.f32 %v130, %v145
    %v151 = vmul.f32 %v130, %v149
    %v152 = vadd.f32 %v150, 0.0
    %v153 = vadd.f32 %v151, 0.0
    %154 = vset.pattern.permute.xlu0 1
    %155 = vperm.xlu0 %154, %v49
    %v156 = vpop.permute.xlu0 %155
    %v158 = vlaneseq
    %v159 = vshrl.u32 %v158, 7
    %v160 = vsub.s32 1, %v159
    %v161 = vrot.slane %v108, %v160
    %v162 = vlaneseq
    %v163 = vshrl.u32 %v162, 7
    %v164 = vsub.s32 1, %v163
    %v165 = vrot.slane %v109, %v164
    %v166 = vmul.f32 %v156, %v161
    %v167 = vmul.f32 %v156, %v165
    %v168 = vadd.f32 %v125, %v166
    %v169 = vadd.f32 %v126, %v167
    %170 = vset.pattern.permute.xlu0 1
    %171 = vperm.xlu0 %170, %v54
    %v172 = vpop.permute.xlu0 %171
    %v174 = vlaneseq
    %v175 = vshrl.u32 %v174, 7
    %v176 = vsub.s32 1, %v175
    %v177 = vrot.slane %v74, %v176
    %v178 = vlaneseq
    %v179 = vshrl.u32 %v178, 7
    %v180 = vsub.s32 5, %v179
    %v181 = vrot.slane %v74, %v180
    %v184 = vlaneseq
    %v185 = vshrl.u32 %v184, 7
    %v186 = vsub.s32 1, %v185
    %v187 = vrot.slane %v177, %v186
    %v188 = vlaneseq
    %v189 = vshrl.u32 %v188, 7
    %v190 = vsub.s32 1, %v189
    %v191 = vrot.slane %v181, %v190
    %v192 = vmul.f32 %v172, %v187
    %v193 = vmul.f32 %v172, %v191
    %v194 = vadd.f32 %v152, %v192
    %v195 = vadd.f32 %v153, %v193
    %196 = vset.pattern.permute.xlu0 2
    %197 = vperm.xlu0 %196, %v49
    %v198 = vpop.permute.xlu0 %197
    %v200 = vlaneseq
    %v201 = vshrl.u32 %v200, 7
    %v202 = vsub.s32 2, %v201
    %v203 = vrot.slane %v108, %v202
    %v204 = vlaneseq
    %v205 = vshrl.u32 %v204, 7
    %v206 = vsub.s32 2, %v205
    %v207 = vrot.slane %v109, %v206
    %v208 = vmul.f32 %v198, %v203
    %v209 = vmul.f32 %v198, %v207
    %v210 = vadd.f32 %v168, %v208
    %v211 = vadd.f32 %v169, %v209
    %212 = vset.pattern.permute.xlu0 2
    %213 = vperm.xlu0 %212, %v54
    %v214 = vpop.permute.xlu0 %213
    %v216 = vlaneseq
    %v217 = vshrl.u32 %v216, 7
    %v218 = vsub.s32 2, %v217
    %v219 = vrot.slane %v74, %v218
    %v220 = vlaneseq
    %v221 = vshrl.u32 %v220, 7
    %v222 = vsub.s32 6, %v221
    %v223 = vrot.slane %v74, %v222
    %v226 = vlaneseq
    %v227 = vshrl.u32 %v226, 7
    %v228 = vsub.s32 2, %v227
    %v229 = vrot.slane %v219, %v228
    %v230 = vlaneseq
    %v231 = vshrl.u32 %v230, 7
    %v232 = vsub.s32 2, %v231
    %v233 = vrot.slane %v223, %v232
    %v234 = vmul.f32 %v214, %v229
    %v235 = vmul.f32 %v214, %v233
    %v236 = vadd.f32 %v194, %v234
    %v237 = vadd.f32 %v195, %v235
    %238 = vset.pattern.permute.xlu0 3
    %239 = vperm.xlu0 %238, %v49
    %v240 = vpop.permute.xlu0 %239
    %v242 = vlaneseq
    %v243 = vshrl.u32 %v242, 7
    %v244 = vsub.s32 3, %v243
    %v245 = vrot.slane %v108, %v244
    %v246 = vlaneseq
    %v247 = vshrl.u32 %v246, 7
    %v248 = vsub.s32 3, %v247
    %v249 = vrot.slane %v109, %v248
    %v250 = vmul.f32 %v240, %v245
    %v251 = vmul.f32 %v240, %v249
    %v252 = vadd.f32 %v210, %v250
    %v253 = vadd.f32 %v211, %v251
    %254 = vset.pattern.permute.xlu0 3
    %255 = vperm.xlu0 %254, %v54
    %v256 = vpop.permute.xlu0 %255
    %v258 = vlaneseq
    %v259 = vshrl.u32 %v258, 7
    %v260 = vsub.s32 3, %v259
    %v261 = vrot.slane %v74, %v260
    %v262 = vlaneseq
    %v263 = vshrl.u32 %v262, 7
    %v264 = vsub.s32 7, %v263
    %v265 = vrot.slane %v74, %v264
    %v268 = vlaneseq
    %v269 = vshrl.u32 %v268, 7
    %v270 = vsub.s32 3, %v269
    %v271 = vrot.slane %v261, %v270
    %v272 = vlaneseq
    %v273 = vshrl.u32 %v272, 7
    %v274 = vsub.s32 3, %v273
    %v275 = vrot.slane %v265, %v274
    %v276 = vmul.f32 %v256, %v271
    %v277 = vmul.f32 %v256, %v275
    %v278 = vadd.f32 %v236, %v276
    %v279 = vadd.f32 %v237, %v277
    %280 = vrot.lane.b32.xlu0 %v252, 1
    %v281 = vpop.permute.xlu0 %280
    %282 = vrot.lane.b32.xlu0 %v253, 1
    %v283 = vpop.permute.xlu0 %282
    %vm284 = vcmp.lt.s32.totalorder %v56, 1
    %v285 = vsel %vm284, %v281, %v283
    %v286 = vsel %vm284, %v283, %v281
    %v287 = vsel %vm63, %v286, %v252
    %v288 = vsel %vm63, %v285, %v253
    %289 = vrot.lane.b32.xlu0 %v287, 2
    %v290 = vpop.permute.xlu0 %289
    %291 = vrot.lane.b32.xlu0 %v288, 2
    %v292 = vpop.permute.xlu0 %291
    %vm293 = vcmp.lt.s32.totalorder %v56, 2
    %v294 = vsel %vm293, %v290, %v292
    %v295 = vsel %vm293, %v292, %v290
    %v296 = vsel %vm65, %v295, %v287
    %v297 = vsel %vm65, %v294, %v288
    %298 = vrot.lane.b32.xlu0 %v296, 4
    %v299 = vpop.permute.xlu0 %298
    %300 = vrot.lane.b32.xlu0 %v297, 4
    %v301 = vpop.permute.xlu0 %300
    %vm302 = vcmp.lt.s32.totalorder %v56, 4
    %v303 = vsel %vm302, %v299, %v301
    %v304 = vsel %vm302, %v301, %v299
    %v305 = vsel %vm71, %v304, %v296
    %v306 = vsel %vm71, %v303, %v297
    %307 = vrot.lane.b32.xlu0 %v305, 112
    %v308 = vpop.permute.xlu0 %307
    %309 = vrot.lane.b32.xlu0 %v306, 112
    %v310 = vpop.permute.xlu0 %309
    %vm311 = vcmp.lt.s32.totalorder %v56, 112
    %v312 = vsel %vm311, %v308, %v310
    %v313 = vsel %vm311, %v310, %v308
    %v314 = vsel %vm72, %v305, %v312
    %v315 = vsel %vm73, %v306, %v313
    %v316 = vmul.f32 %v314, %v50
    %v317 = vmul.f32 %v315, %v51
    %v318 = vadd.f32 %v316, %v52
    %v319 = vadd.f32 %v317, %v53
    %v320 = vadd.f32 %v318, %v278
    %v321 = vadd.f32 %v319, %v279
    %v322 = vmax.f32 %v320, 0.0
    %v323 = vmax.f32 %v321, 0.0
    %324 = vst [vmem:[#allocation7] sm:$0xff] %v322
    %325 = vst [vmem:[#allocation7 + $0x8] sm:$0xff] %v323
    %s326 = scalar_lea.vmem %s0, 8
    %v327 = vld [vmem:[%s326] sm:$0xff]
    %v329 = vcombine.high %v327, %v327
    %331 = vrot.lane.b32.xlu0 %v327, 127
    %v332 = vpop.permute.xlu0 %331
    %333 = vrot.lane.b32.xlu0 %v329, 127
    %v334 = vpop.permute.xlu0 %333
    %v335 = vsel %vm82, %v332, %v334
    %v336 = vsel %vm82, %v334, %v332
    %v337 = vsel %vm63, %v335, %v327
    %v338 = vsel %vm63, %v336, %v329
    %339 = vrot.lane.b32.xlu0 %v337, 126
    %v340 = vpop.permute.xlu0 %339
    %341 = vrot.lane.b32.xlu0 %v338, 126
    %v342 = vpop.permute.xlu0 %341
    %v343 = vsel %vm91, %v340, %v342
    %v344 = vsel %vm91, %v342, %v340
    %v345 = vsel %vm65, %v343, %v337
    %v346 = vsel %vm65, %v344, %v338
    %347 = vrot.lane.b32.xlu0 %v345, 16
    %v348 = vpop.permute.xlu0 %347
    %349 = vrot.lane.b32.xlu0 %v346, 16
    %v350 = vpop.permute.xlu0 %349
    %v351 = vsel %vm100, %v348, %v350
    %v352 = vsel %vm100, %v350, %v348
    %v353 = vsel %vm68, %v345, %v352
    %v354 = vsel %vm69, %v346, %v351
    %v355 = vmul.f32 %v353, %v48
    %v356 = vmul.f32 %v354, %v106
    %v357 = vlaneseq
    %v358 = vshrl.u32 %v357, 7
    %v359 = vsub.s32 0, %v358
    %v360 = vrot.slane %v355, %v359
    %v361 = vlaneseq
    %v362 = vshrl.u32 %v361, 7
    %v363 = vsub.s32 0, %v362
    %v364 = vrot.slane %v356, %v363
    %v365 = vmul.f32 %v113, %v360
    %v366 = vmul.f32 %v113, %v364
    %v367 = vadd.f32 %v365, 0.0
    %v368 = vadd.f32 %v366, 0.0
    %v369 = vlaneseq
    %v370 = vshrl.u32 %v369, 7
    %v371 = vsub.s32 0, %v370
    %v372 = vrot.slane %v327, %v371
    %v373 = vlaneseq
    %v374 = vshrl.u32 %v373, 7
    %v375 = vsub.s32 4, %v374
    %v376 = vrot.slane %v327, %v375
    %v379 = vlaneseq
    %v380 = vshrl.u32 %v379, 7
    %v381 = vsub.s32 0, %v380
    %v382 = vrot.slane %v372, %v381
    %v383 = vlaneseq
    %v384 = vshrl.u32 %v383, 7
    %v385 = vsub.s32 0, %v384
    %v386 = vrot.slane %v376, %v385
    %v387 = vmul.f32 %v130, %v382
    %v388 = vmul.f32 %v130, %v386
    %v389 = vadd.f32 %v387, 0.0
    %v390 = vadd.f32 %v388, 0.0
    %v391 = vlaneseq
    %v392 = vshrl.u32 %v391, 7
    %v393 = vsub.s32 1, %v392
    %v394 = vrot.slane %v355, %v393
    %v395 = vlaneseq
    %v396 = vshrl.u32 %v395, 7
    %v397 = vsub.s32 1, %v396
    %v398 = vrot.slane %v356, %v397
    %v399 = vmul.f32 %v156, %v394
    %v400 = vmul.f32 %v156, %v398
    %v401 = vadd.f32 %v367, %v399
    %v402 = vadd.f32 %v368, %v400
    %v403 = vlaneseq
    %v404 = vshrl.u32 %v403, 7
    %v405 = vsub.s32 1, %v404
    %v406 = vrot.slane %v327, %v405
    %v407 = vlaneseq
    %v408 = vshrl.u32 %v407, 7
    %v409 = vsub.s32 5, %v408
    %v410 = vrot.slane %v327, %v409
    %v413 = vlaneseq
    %v414 = vshrl.u32 %v413, 7
    %v415 = vsub.s32 1, %v414
    %v416 = vrot.slane %v406, %v415
    %v417 = vlaneseq
    %v418 = vshrl.u32 %v417, 7
    %v419 = vsub.s32 1, %v418
    %v420 = vrot.slane %v410, %v419
    %v421 = vmul.f32 %v172, %v416
    %v422 = vmul.f32 %v172, %v420
    %v423 = vadd.f32 %v389, %v421
    %v424 = vadd.f32 %v390, %v422
    %v425 = vlaneseq
    %v426 = vshrl.u32 %v425, 7
    %v427 = vsub.s32 2, %v426
    %v428 = vrot.slane %v355, %v427
    %v429 = vlaneseq
    %v430 = vshrl.u32 %v429, 7
    %v431 = vsub.s32 2, %v430
    %v432 = vrot.slane %v356, %v431
    %v433 = vmul.f32 %v198, %v428
    %v434 = vmul.f32 %v198, %v432
    %v435 = vadd.f32 %v401, %v433
    %v436 = vadd.f32 %v402, %v434
    %v437 = vlaneseq
    %v438 = vshrl.u32 %v437, 7
    %v439 = vsub.s32 2, %v438
    %v440 = vrot.slane %v327, %v439
    %v441 = vlaneseq
    %v442 = vshrl.u32 %v441, 7
    %v443 = vsub.s32 6, %v442
    %v444 = vrot.slane %v327, %v443
    %v447 = vlaneseq
    %v448 = vshrl.u32 %v447, 7
    %v449 = vsub.s32 2, %v448
    %v450 = vrot.slane %v440, %v449
    %v451 = vlaneseq
    %v452 = vshrl.u32 %v451, 7
    %v453 = vsub.s32 2, %v452
    %v454 = vrot.slane %v444, %v453
    %v455 = vmul.f32 %v214, %v450
    %v456 = vmul.f32 %v214, %v454
    %v457 = vadd.f32 %v423, %v455
    %v458 = vadd.f32 %v424, %v456
    %v459 = vlaneseq
    %v460 = vshrl.u32 %v459, 7
    %v461 = vsub.s32 3, %v460
    %v462 = vrot.slane %v355, %v461
    %v463 = vlaneseq
    %v464 = vshrl.u32 %v463, 7
    %v465 = vsub.s32 3, %v464
    %v466 = vrot.slane %v356, %v465
    %v467 = vmul.f32 %v240, %v462
    %v468 = vmul.f32 %v240, %v466
    %v469 = vadd.f32 %v435, %v467
    %v470 = vadd.f32 %v436, %v468
    %v471 = vlaneseq
    %v472 = vshrl.u32 %v471, 7
    %v473 = vsub.s32 3, %v472
    %v474 = vrot.slane %v327, %v473
    %v475 = vlaneseq
    %v476 = vshrl.u32 %v475, 7
    %v477 = vsub.s32 7, %v476
    %v478 = vrot.slane %v327, %v477
    %v481 = vlaneseq
    %v482 = vshrl.u32 %v481, 7
    %v483 = vsub.s32 3, %v482
    %v484 = vrot.slane %v474, %v483
    %v485 = vlaneseq
    %v486 = vshrl.u32 %v485, 7
    %v487 = vsub.s32 3, %v486
    %v488 = vrot.slane %v478, %v487
    %v489 = vmul.f32 %v256, %v484
    %v490 = vmul.f32 %v256, %v488
    %v491 = vadd.f32 %v457, %v489
    %v492 = vadd.f32 %v458, %v490
    %493 = vrot.lane.b32.xlu0 %v469, 1
    %v494 = vpop.permute.xlu0 %493
    %495 = vrot.lane.b32.xlu0 %v470, 1
    %v496 = vpop.permute.xlu0 %495
    %v497 = vsel %vm284, %v494, %v496
    %v498 = vsel %vm284, %v496, %v494
    %v499 = vsel %vm63, %v498, %v469
    %v500 = vsel %vm63, %v497, %v470
    %501 = vrot.lane.b32.xlu0 %v499, 2
    %v502 = vpop.permute.xlu0 %501
    %503 = vrot.lane.b32.xlu0 %v500, 2
    %v504 = vpop.permute.xlu0 %503
    %v505 = vsel %vm293, %v502, %v504
    %v506 = vsel %vm293, %v504, %v502
    %v507 = vsel %vm65, %v506, %v499
    %v508 = vsel %vm65, %v505, %v500
    %509 = vrot.lane.b32.xlu0 %v507, 4
    %v510 = vpop.permute.xlu0 %509
    %511 = vrot.lane.b32.xlu0 %v508, 4
    %v512 = vpop.permute.xlu0 %511
    %v513 = vsel %vm302, %v510, %v512
    %v514 = vsel %vm302, %v512, %v510
    %v515 = vsel %vm71, %v514, %v507
    %v516 = vsel %vm71, %v513, %v508
    %517 = vrot.lane.b32.xlu0 %v515, 112
    %v518 = vpop.permute.xlu0 %517
    %519 = vrot.lane.b32.xlu0 %v516, 112
    %v520 = vpop.permute.xlu0 %519
    %v521 = vsel %vm311, %v518, %v520
    %v522 = vsel %vm311, %v520, %v518
    %v523 = vsel %vm72, %v515, %v521
    %v524 = vsel %vm73, %v516, %v522
    %v525 = vmul.f32 %v523, %v50
    %v526 = vmul.f32 %v524, %v51
    %v527 = vadd.f32 %v525, %v52
    %v528 = vadd.f32 %v526, %v53
    %v529 = vadd.f32 %v527, %v491
    %v530 = vadd.f32 %v528, %v492
    %v531 = vmax.f32 %v529, 0.0
    %v532 = vmax.f32 %v530, 0.0
    %s533 = scalar_lea.vmem [#allocation7], 16
    %534 = vst [vmem:[%s533] sm:$0xff] %v531
    %535 = vst [vmem:[%s533 + $0x8] sm:$0xff] %v532
    // Predicated region
    $region34: #{tpu_custom_call.1} parent=1 // pred_check
      _
    $region35: #{tpu_custom_call.1} parent=1 // pred_check_branch
      %537 = sbr.rel (0) target = $region37
    $region36: #{tpu_custom_call.1} parent=1 // pred_region
      %s539 = ssub.s32 512, 512
      %540 = vsyncadd [#allocation4], %s539
      %s541 = sshll.u32 [#allocation7], 4
      %s542 = int_to_ptr.vmem [resolvable:$true] %s541
      %547 = dma.vmem_to_hbm [thread:$0]  %s542, 512, %s6, [#allocation4], 256, 256, 16
    $region37: #{tpu_custom_call.1} parent=1 // pred_fallthru
      _
    // Predicated region
    $region38: #{tpu_custom_call.1} parent=1 // pred_check
      _
    $region39: #{tpu_custom_call.1} parent=1 // pred_check_branch
      %549 = sbr.rel (0) target = $region41
    $region40: #{tpu_custom_call.1} parent=1 // pred_region
      %550 = dma.done [#allocation4], 512
    $region41: #{tpu_custom_call.1} parent=1 // pred_fallthru
      _
    %551 = vsyncpa [#allocation3], 1
    %552 = vsyncpa [#allocation6], 1
    %553 = vsyncpa [#allocation4], 1

</llo_original>
